<compile_context>
chip_gen: v7x
topology: tpu7x:2x2x1
jax: 0.10.0
libtpu: 0.0.40
codegen_flags: <defaults>
</compile_context>

<pallas_src>
import math
from functools import partial

import jax
import jax.numpy as jnp
from jax import lax
from jax.experimental import pallas as pl
from jax.experimental.pallas import tpu as pltpu

LN_EPS = 1e-12                      # BERT default layer_norm_eps
VMEM_LIMIT = 48 * 1024 * 1024       # safe on v5e/v6e (128 MiB) and v7x (64 MiB)


def _pick_tile(dim, target, align):
    """Largest tile <= target that is a multiple of `align` and divides `dim`;
    falls back to the full dim (always legal as a block shape)."""
    if dim <= target:
        return dim
    t = (target // align) * align
    while t >= align:
        if dim % t == 0:
            return t
        t -= align
    return dim


# ---------------------------------------------------------------------------
# Tiled dense:  y = act(x @ W + b)
# ---------------------------------------------------------------------------
def _matmul_kernel(x_ref, w_ref, b_ref, o_ref, acc_ref, *, activation):
    k = pl.program_id(2)

    @pl.when(k == 0)
    def _():
        acc_ref[...] = jnp.zeros_like(acc_ref)

    acc_ref[...] += jnp.dot(
        x_ref[...].astype(jnp.bfloat16),
        w_ref[...].astype(jnp.bfloat16),
        preferred_element_type=jnp.float32,
    )

    @pl.when(k == pl.num_programs(2) - 1)
    def _():
        y = acc_ref[...] + b_ref[...].astype(jnp.float32)
        if activation == "gelu":
            # exact (erf) gelu, matching torch.nn.functional.gelu default
            y = 0.5 * y * (1.0 + lax.erf(y * (1.0 / math.sqrt(2.0))))
        o_ref[...] = y.astype(o_ref.dtype)


def dense(x, w, b, activation=None, out_dtype=None):
    """x: (M, K), w: (K, N) bf16, b: (N,) f32 -> (M, N) out_dtype."""
    M, K = x.shape
    N = w.shape[1]
    out_dtype = out_dtype or x.dtype
    tm = _pick_tile(M, 256, 8)      # conservative tile budget: fits v7x's 64 MiB VMEM
    tn = _pick_tile(N, 256, 128)
    tk = _pick_tile(K, 512, 128)
    grid = (M // tm, N // tn, K // tk)
    return pl.pallas_call(
        partial(_matmul_kernel, activation=activation),
        out_shape=jax.ShapeDtypeStruct((M, N), out_dtype),
        grid=grid,
        in_specs=[
            pl.BlockSpec((tm, tk), lambda i, j, k: (i, k)),
            pl.BlockSpec((tk, tn), lambda i, j, k: (k, j)),
            pl.BlockSpec((1, tn), lambda i, j, k: (0, j)),
        ],
        out_specs=pl.BlockSpec((tm, tn), lambda i, j, k: (i, j)),
        scratch_shapes=[pltpu.VMEM((tm, tn), jnp.float32)],
        compiler_params=pltpu.CompilerParams(
            dimension_semantics=("parallel", "parallel", "arbitrary"),
            vmem_limit_bytes=VMEM_LIMIT,
        ),
    )(x, w, b.reshape(1, N))


# ---------------------------------------------------------------------------
# Tiled dense with fused epilogue:  y = LayerNorm(x @ W + b + residual)
# (full output width N so the LayerNorm statistics cover the whole hidden dim)
# ---------------------------------------------------------------------------
def _matmul_add_ln_kernel(x_ref, w_ref, b_ref, r_ref, g_ref, bt_ref, o_ref, acc_ref):
    k = pl.program_id(1)

    @pl.when(k == 0)
    def _():
        acc_ref[...] = jnp.zeros_like(acc_ref)

    acc_ref[...] += jnp.dot(
        x_ref[...].astype(jnp.bfloat16),
        w_ref[...].astype(jnp.bfloat16),
        preferred_element_type=jnp.float32,
    )

    @pl.when(k == pl.num_programs(1) - 1)
    def _():
        y = acc_ref[...] + b_ref[...].astype(jnp.float32) + r_ref[...].astype(jnp.float32)
        mean = jnp.mean(y, axis=-1, keepdims=True)
        var = jnp.mean((y - mean) ** 2, axis=-1, keepdims=True)
        normed = (y - mean) * lax.rsqrt(var + LN_EPS)
        o_ref[...] = (normed * g_ref[...] + bt_ref[...]).astype(o_ref.dtype)


def dense_add_ln(x, w, b, residual, gamma, beta):
    """LayerNorm(x @ w + b + residual); x: (M,K), w: (K,N), residual: (M,N)."""
    M, K = x.shape
    N = w.shape[1]
    tm = _pick_tile(M, 256, 8)
    tk = _pick_tile(K, 512, 128)
    grid = (M // tm, K // tk)
    return pl.pallas_call(
        _matmul_add_ln_kernel,
        out_shape=jax.ShapeDtypeStruct((M, N), residual.dtype),
        grid=grid,
        in_specs=[
            pl.BlockSpec((tm, tk), lambda i, k: (i, k)),
            pl.BlockSpec((tk, N), lambda i, k: (k, 0)),
            pl.BlockSpec((1, N), lambda i, k: (0, 0)),
            pl.BlockSpec((tm, N), lambda i, k: (i, 0)),   # residual (DMA'd once per i)
            pl.BlockSpec((1, N), lambda i, k: (0, 0)),
            pl.BlockSpec((1, N), lambda i, k: (0, 0)),
        ],
        out_specs=pl.BlockSpec((tm, N), lambda i, k: (i, 0)),
        scratch_shapes=[pltpu.VMEM((tm, N), jnp.float32)],
        compiler_params=pltpu.CompilerParams(
            dimension_semantics=("parallel", "arbitrary"),
            vmem_limit_bytes=VMEM_LIMIT,
        ),
    )(x, w, b.reshape(1, N), residual, gamma.reshape(1, N), beta.reshape(1, N))


# ---------------------------------------------------------------------------
# Attention core: one batch element per grid step, all heads in-kernel,
# lane-dense (S, H) context output in (B, S, H) layout.
# TODO(synk): for long sequences (S >~ 1024) switch to flash-style q/kv tiling
# with online softmax so the (S,S) score block stays bounded in VMEM.
# ---------------------------------------------------------------------------
def _attn_kernel(qkv_ref, m_ref, o_ref, *, num_heads, head_dim, hidden, scale):
    mask = m_ref[0].astype(jnp.float32)               # (1, S) additive
    outs = []
    for h in range(num_heads):
        q = qkv_ref[0, :, h * head_dim:(h + 1) * head_dim]
        k = qkv_ref[0, :, hidden + h * head_dim:hidden + (h + 1) * head_dim]
        v = qkv_ref[0, :, 2 * hidden + h * head_dim:2 * hidden + (h + 1) * head_dim]
        # fold 1/sqrt(dH) into q (S*dH mults instead of S*S)
        qs = (q.astype(jnp.float32) * scale).astype(jnp.bfloat16)
        # contract last dims directly -- no in-kernel transpose of K
        s = lax.dot_general(qs, k.astype(jnp.bfloat16),
                            (((1,), (1,)), ((), ())),
                            preferred_element_type=jnp.float32)
        s = s + mask                                  # (S,S) + (1,S) broadcast
        s = s - jnp.max(s, axis=-1, keepdims=True)
        p = jnp.exp(s)
        p = p * pl.reciprocal(jnp.sum(p, axis=-1, keepdims=True), approx=True)
        outs.append(jnp.dot(p.astype(jnp.bfloat16), v.astype(jnp.bfloat16),
                            preferred_element_type=jnp.float32))
    o_ref[...] = jnp.concatenate(outs, axis=-1)[None, :, :].astype(o_ref.dtype)


def attention_core(qkv, ext_mask, num_heads):
    """qkv: (B, S, 3H) bf16, ext_mask: (B, 1, S) additive -> ctx: (B, S, H) bf16."""
    B, S, H3 = qkv.shape
    hidden = H3 // 3
    head_dim = hidden // num_heads
    scale = 1.0 / math.sqrt(head_dim)
    return pl.pallas_call(
        partial(_attn_kernel, num_heads=num_heads, head_dim=head_dim,
                hidden=hidden, scale=scale),
        out_shape=jax.ShapeDtypeStruct((B, S, hidden), qkv.dtype),
        grid=(B,),
        in_specs=[
            pl.BlockSpec((1, S, H3), lambda b: (b, 0, 0)),
            pl.BlockSpec((1, 1, S), lambda b: (b, 0, 0)),   # original mask, no replication
        ],
        out_specs=pl.BlockSpec((1, S, hidden), lambda b: (b, 0, 0)),
        compiler_params=pltpu.CompilerParams(
            dimension_semantics=("parallel",),
            vmem_limit_bytes=VMEM_LIMIT,
        ),
    )(qkv, ext_mask)


# ---------------------------------------------------------------------------
# Model wrapper (plain-JAX glue; no transposes / HBM round trips)
# ---------------------------------------------------------------------------
def bert_layer(x, ext_mask, p, num_heads):
    """One BertLayer. x: (B, S, H) f32, ext_mask: (B, 1, S) additive."""
    B, S, H = x.shape
    x2 = x.reshape(B * S, H)

    # fused Q|K|V projection, intermediate kept bf16 (half the HBM traffic)
    qkv = dense(x2, p["w_qkv"], p["b_qkv"], out_dtype=jnp.bfloat16)      # (B*S, 3H)
    ctx = attention_core(qkv.reshape(B, S, 3 * H), ext_mask, num_heads)  # (B, S, H) bf16
    ctx2 = ctx.reshape(B * S, H)

    # o-proj + bias + residual + LayerNorm fused; residual/LN stream stays f32
    attn = dense_add_ln(ctx2, p["wo"], p["bo"], x2, p["ln1_g"], p["ln1_b"])
    # FFN-1 with fused exact gelu; hidden activation kept bf16
    inter = dense(attn, p["wi"], p["bi"], activation="gelu", out_dtype=jnp.bfloat16)
    # FFN-2 + bias + residual + LayerNorm fused
    y = dense_add_ln(inter, p["wo2"], p["bo2"], attn, p["ln2_g"], p["ln2_b"])
    return y.reshape(B, S, H)


def kebio_context_entity_encoder(hidden_states, attention_mask, layer_params, num_heads):
    """Forward of KebioContextEntityEncoder (return_dict=False, no output_*)."""
    # HF-style extended mask: (B, 1, S) additive, 0 for keep / -10000 for masked.
    ext_mask = (1.0 - attention_mask.astype(jnp.float32))[:, None, :] * -10000.0
    x = hidden_states
    for p in layer_params:
        x = bert_layer(x, ext_mask, p, num_heads)
    return (x,)  # matches `return tuple(v for v in [...] if v is not None)`


# ---------------------------------------------------------------------------
# Deterministic parameter init (weights stored bf16 for the MXU; bias/LN in f32)
# ---------------------------------------------------------------------------
def init_layer_params(key, hidden, intermediate):
    ks = jax.random.split(key, 6)
    std = 0.02

    def w(k, shape):
        return (std * jax.random.normal(k, shape)).astype(jnp.float32)

    wq, wk, wv = w(ks[0], (hidden, hidden)), w(ks[1], (hidden, hidden)), w(ks[2], (hidden, hidden))
    return {
        "w_qkv": jnp.concatenate([wq, wk, wv], axis=1).astype(jnp.bfloat16),
        "b_qkv": jnp.zeros((3 * hidden,), jnp.float32),
        "wo": w(ks[3], (hidden, hidden)).astype(jnp.bfloat16),
        "bo": jnp.zeros((hidden,), jnp.float32),
        "ln1_g": jnp.ones((hidden,), jnp.float32), "ln1_b": jnp.zeros((hidden,), jnp.float32),
        "wi": w(ks[4], (hidden, intermediate)).astype(jnp.bfloat16),
        "bi": jnp.zeros((intermediate,), jnp.float32),
        "wo2": w(ks[5], (intermediate, hidden)).astype(jnp.bfloat16),
        "bo2": jnp.zeros((hidden,), jnp.float32),
        "ln2_g": jnp.ones((hidden,), jnp.float32), "ln2_b": jnp.zeros((hidden,), jnp.float32),
    }


if __name__ == "__main__":
    # Small synthetic config: hidden=32, heads=4, intermediate=64,
    # num_hidden_layers=4, num_context_layers=2  ->  this encoder has 2 layers.
    B, S, H = 2, 8, 32
    NUM_HEADS = 4
    INTERMEDIATE = 64
    NUM_LAYERS = 4 - 2

    key = jax.random.PRNGKey(0)
    k_x, *k_layers = jax.random.split(key, 1 + NUM_LAYERS)

    hidden_states = jax.random.normal(k_x, (B, S, H), dtype=jnp.float32)
    # attention_mask: 1 = attend, 0 = masked (last two tokens of batch 1 masked)
    attention_mask = jnp.ones((B, S), dtype=jnp.float32)
    attention_mask = attention_mask.at[1, S - 2:].set(0.0)

    params = [init_layer_params(k, H, INTERMEDIATE) for k in k_layers]

    out = kebio_context_entity_encoder(hidden_states, attention_mask, params, NUM_HEADS)
    last_hidden = jax.block_until_ready(out[0])
    assert last_hidden.shape == (B, S, H)
    assert jnp.all(jnp.isfinite(last_hidden))
    print("KERNEL_OK")
</pallas_src>

<mosaic_0001>
module attributes {stable_mosaic.version = 11 : i64} {
  func.func @_matmul_kernel(%arg0: i32, %arg1: i32, %arg2: i32, %arg3: memref<16x32xf32, #tpu.memory_space<vmem>>, %arg4: memref<32x96xbf16, #tpu.memory_space<vmem>>, %arg5: memref<1x96xf32, #tpu.memory_space<vmem>>, %arg6: memref<16x96xbf16, #tpu.memory_space<vmem>>, %arg7: memref<16x96xf32, #tpu.memory_space<vmem>>) attributes {dimension_semantics = [#tpu.dimension_semantics<parallel>, #tpu.dimension_semantics<parallel>, #tpu.dimension_semantics<arbitrary>], iteration_bounds = array<i64: 1, 1, 1>, scalar_prefetch = 0 : i64, scratch_operands = 1 : i64, tpu.core_type = #tpu.core_type<tc>, window_params = [{transform_indices = @transform_0, window_bounds = array<i64: 16, 32>}, {transform_indices = @transform_1, window_bounds = array<i64: 32, 96>}, {transform_indices = @transform_2, window_bounds = array<i64: 1, 96>}, {transform_indices = @transform_3, window_bounds = array<i64: 16, 96>}]} {
    %c0_i32 = arith.constant 0 : i32
    %0 = arith.cmpi eq, %arg2, %c0_i32 : i32
    %1 = arith.extui %0 : i1 to i32
    %c0_i32_0 = arith.constant 0 : i32
    %2 = arith.cmpi ne, %1, %c0_i32_0 : i32
    scf.if %2 {
      %cst_10 = arith.constant 0.000000e+00 : f32
      %13 = vector.broadcast %cst_10 : f32 to vector<16x96xf32>
      %c0_11 = arith.constant 0 : index
      %c0_12 = arith.constant 0 : index
      %14 = vector.load %arg7[%c0_11, %c0_12] : memref<16x96xf32, #tpu.memory_space<vmem>>, vector<16x96xf32>
      tpu.vector_store %arg7[%c0_11, %c0_12], %13 {strides = array<i32>} : memref<16x96xf32, #tpu.memory_space<vmem>>, vector<16x96xf32>,
    } else {
    }
    %c0 = arith.constant 0 : index
    %c0_1 = arith.constant 0 : index
    %3 = vector.load %arg7[%c0, %c0_1] : memref<16x96xf32, #tpu.memory_space<vmem>>, vector<16x96xf32>
    %c0_2 = arith.constant 0 : index
    %c0_3 = arith.constant 0 : index
    %4 = vector.load %arg3[%c0_2, %c0_3] : memref<16x32xf32, #tpu.memory_space<vmem>>, vector<16x32xf32>
    %5 = arith.truncf %4 : vector<16x32xf32> to vector<16x32xbf16>
    %c0_4 = arith.constant 0 : index
    %c0_5 = arith.constant 0 : index
    %6 = vector.load %arg4[%c0_4, %c0_5] : memref<32x96xbf16, #tpu.memory_space<vmem>>, vector<32x96xbf16>
    %cst = arith.constant dense<0.000000e+00> : vector<16x96xf32>
    %7 = tpu.matmul %5, %6, %cst {dimension_numbers = #tpu.dot_dimension_numbers<[1], [0], [0], [1], [0, 0, 1, 1], [], []>} : vector<16x32xbf16>, vector<32x96xbf16>, vector<16x96xf32> -> vector<16x96xf32>
    %8 = arith.addf %3, %7 : vector<16x96xf32>
    %c0_6 = arith.constant 0 : index
    %c0_7 = arith.constant 0 : index
    %9 = vector.load %arg7[%c0_6, %c0_7] : memref<16x96xf32, #tpu.memory_space<vmem>>, vector<16x96xf32>
    tpu.vector_store %arg7[%c0_6, %c0_7], %8 {strides = array<i32>} : memref<16x96xf32, #tpu.memory_space<vmem>>, vector<16x96xf32>,
    %c0_i32_8 = arith.constant 0 : i32
    %10 = arith.cmpi eq, %arg2, %c0_i32_8 : i32
    %11 = arith.extui %10 : i1 to i32
    %c0_i32_9 = arith.constant 0 : i32
    %12 = arith.cmpi ne, %11, %c0_i32_9 : i32
    scf.if %12 {
      %c0_10 = arith.constant 0 : index
      %c0_11 = arith.constant 0 : index
      %13 = vector.load %arg7[%c0_10, %c0_11] : memref<16x96xf32, #tpu.memory_space<vmem>>, vector<16x96xf32>
      %c0_12 = arith.constant 0 : index
      %c0_13 = arith.constant 0 : index
      %14 = vector.load %arg5[%c0_12, %c0_13] : memref<1x96xf32, #tpu.memory_space<vmem>>, vector<1x96xf32>
      %15 = vector.broadcast %14 : vector<1x96xf32> to vector<16x96xf32>
      %16 = arith.addf %13, %15 : vector<16x96xf32>
      %17 = arith.truncf %16 : vector<16x96xf32> to vector<16x96xbf16>
      %c0_14 = arith.constant 0 : index
      %c0_15 = arith.constant 0 : index
      %18 = vector.load %arg6[%c0_14, %c0_15] : memref<16x96xbf16, #tpu.memory_space<vmem>>, vector<16x96xbf16>
      tpu.vector_store %arg6[%c0_14, %c0_15], %17 {strides = array<i32>} : memref<16x96xbf16, #tpu.memory_space<vmem>>, vector<16x96xbf16>,
    } else {
    }
    return
  }
  func.func @transform_0(%arg0: i32, %arg1: i32, %arg2: i32) -> (i32, i32) {
    %c0_i32 = arith.constant 0 : i32
    return %arg0, %arg2 : i32, i32
  }
  func.func @transform_1(%arg0: i32, %arg1: i32, %arg2: i32) -> (i32, i32) {
    %c0_i32 = arith.constant 0 : i32
    return %arg2, %arg1 : i32, i32
  }
  func.func @transform_2(%arg0: i32, %arg1: i32, %arg2: i32) -> (i32, i32) {
    %c0_i32 = arith.constant 0 : i32
    %c0_i32_0 = arith.constant 0 : i32
    return %c0_i32, %arg1 : i32, i32
  }
  func.func @transform_3(%arg0: i32, %arg1: i32, %arg2: i32) -> (i32, i32) {
    %c0_i32 = arith.constant 0 : i32
    return %arg0, %arg1 : i32, i32
  }
}

</mosaic_0001>

<llo_original>
// kernel: tpu_custom_call.1
$region0: #{tpu_custom_call.1}
  #allocation0 [shape = 'u32[]', space=smem, size = 0x4, offset = 0x4, fixed_abs, tag = 'smem constant byte address 0x4 - core index']
  #allocation1 [shape = 'u32[144,128]{1,0:T(1,128)}', space=vmem, size = 0x12000, scoped, tag = 'internal scratch']
  #allocation2 [shape = 'f32[16,96]{1,0:T(8,128)}', space=vmem, size = 0x2000, scoped, tag = 'scratch operand']
  %s0 = inlined_call_operand.hbm [shape: f32[16,32], index: 0, kind: input, shape index: {}]
  %s1 = inlined_call_operand.hbm [shape: bf16[32,96], index: 1, kind: input, shape index: {}]
  %s2 = inlined_call_operand.vmem [shape: f32[1,96], index: 2, kind: input, shape index: {}]
  %s3 = inlined_call_operand.hbm [shape: bf16[16,96], index: 3, kind: output, shape index: {}]
  %s4 = sld [smem:[#allocation0]]
  $region38: #{tpu_custom_call.1} parent=0
    _
  %s6 = ssub.s32 1, %s4
  %s7 = scalar_select 0, %s6, %s4
  $region1: #{tpu_custom_call.1} parent=0
    #allocation3 [shape = 'u8[8192]{0}', space=vmem, size = 0x2000, scoped, tag = 'input window, operand 0, single buffered']
    #allocation4 [shape = 's32[1]{0}', space=sflag, size = 0x4, scoped, tag = 'scoped memory for tpu_custom_call.1']
    #allocation5 [shape = 's32[1]{0}', space=sflag, size = 0x4, scoped, tag = 'scoped memory for tpu_custom_call.1']
    #allocation6 [shape = 'u8[8192]{0}', space=vmem, size = 0x2000, scoped, tag = 'input window, operand 1, single buffered']
    #allocation7 [shape = 's32[1]{0}', space=sflag, size = 0x4, scoped, tag = 'scoped memory for tpu_custom_call.1']
    #allocation8 [shape = 'u8[4096]{0}', space=vmem, size = 0x1000, scoped, tag = 'output window, operand 0, single buffered']
    %8 = vsyncpa [#allocation4], 0
    %9 = vsyncpa [#allocation7], 0
    %10 = vsyncpa [#allocation5], 0
    // Predicated region
    $region2: #{tpu_custom_call.1} parent=1 // pred_check
      _
    $region3: #{tpu_custom_call.1} parent=1 // pred_check_branch
      %12 = sbr.rel (0) target = $region5
    $region4: #{tpu_custom_call.1} parent=1 // pred_region
      %s14 = ssub.s32 256, 256
      %15 = vsyncadd [#allocation4], %s14
      %s16 = sshll.u32 [#allocation3], 4
      %s17 = int_to_ptr.vmem [resolvable:$true] %s16
      %22 = dma.hbm_to_vmem [thread:$0]  %s0, 256, %s17, [#allocation4], 128, 128, 8
    $region5: #{tpu_custom_call.1} parent=1 // pred_fallthru
      _
    // Predicated region
    $region6: #{tpu_custom_call.1} parent=1 // pred_check
      _
    $region7: #{tpu_custom_call.1} parent=1 // pred_check_branch
      %24 = sbr.rel (0) target = $region9
    $region8: #{tpu_custom_call.1} parent=1 // pred_region
      %s26 = ssub.s32 256, 256
      %27 = vsyncadd [#allocation7], %s26
      %s28 = sshll.u32 [#allocation6], 4
      %s29 = int_to_ptr.vmem [resolvable:$true] %s28
      %34 = dma.hbm_to_vmem [thread:$0]  %s1, 256, %s29, [#allocation7], 64, 64, 4
    $region9: #{tpu_custom_call.1} parent=1 // pred_fallthru
      _
    // Predicated region
    $region10: #{tpu_custom_call.1} parent=1 // pred_check
      _
    $region11: #{tpu_custom_call.1} parent=1 // pred_check_branch
      %36 = sbr.rel (0) target = $region13
    $region12: #{tpu_custom_call.1} parent=1 // pred_region
      _
    $region13: #{tpu_custom_call.1} parent=1 // pred_fallthru
      _
    // Predicated region
    $region14: #{tpu_custom_call.1} parent=1 // pred_check
      _
    $region15: #{tpu_custom_call.1} parent=1 // pred_check_branch
      %38 = sbr.rel (0) target = $region17
    $region16: #{tpu_custom_call.1} parent=1 // pred_region
      %39 = dma.done [#allocation4], 256
    $region17: #{tpu_custom_call.1} parent=1 // pred_fallthru
      _
    // Predicated region
    $region18: #{tpu_custom_call.1} parent=1 // pred_check
      _
    $region19: #{tpu_custom_call.1} parent=1 // pred_check_branch
      %41 = sbr.rel (0) target = $region21
    $region20: #{tpu_custom_call.1} parent=1 // pred_region
      %42 = dma.done [#allocation7], 256
    $region21: #{tpu_custom_call.1} parent=1 // pred_fallthru
      _
    %p44 = scmp.eq.s32.totalorder 0, 0
    // Predicated region
    $region22: #{tpu_custom_call.1} parent=1 // pred_check
      %p45 = pneg %p44
    $region23: #{tpu_custom_call.1} parent=1 // pred_check_branch
      %47 = sbr.rel (%p45) target = $region25
    $region24: #{tpu_custom_call.1} parent=1 // pred_region
      %vm48 = vcmask 785408
      %49 = vst.msk [vmem:[#allocation2] sm:$0xff] %vm48, 0.0
      %50 = vst.msk [vmem:[#allocation2 + $0x8] sm:$0xff] %vm48, 0.0
    $region25: #{tpu_custom_call.1} parent=1 // pred_fallthru
      _
    %v51 = vld [vmem:[#allocation2] sm:$0xff]
    %v52 = vld [vmem:[#allocation2 + $0x8] sm:$0xff]
    %v53 = vld [vmem:[#allocation3] sm:$0xff]
    %v54 = vld [vmem:[#allocation3 + $0x8] sm:$0xff]
    %v55 = vpack.c.bf16 %v54, %v53
    %v56 = vld [vmem:[#allocation6] sm:$0xf]
    %v57 = vld [vmem:[#allocation6 + $0x4] sm:$0xf]
    %v58 = vld [vmem:[#allocation6 + $0x8] sm:$0xf]
    %v59 = vld [vmem:[#allocation6 + $0xc] sm:$0xf]
    %v64 = vunpack.c.l.b16 %v56
    %v65 = vunpack.c.l.b16 %v57
    %v66 = vunpack.c.l.b16 %v58
    %v67 = vunpack.c.l.b16 %v59
    %v68 = vpack.c.b16 %v65, %v64
    %v69 = vpack.c.b16 %v67, %v66
    %vm72 = vcmask 261120
    %v74 = vsel %vm72, %v55, 0
    %76 = vmatprep.subr.bf16.mxu0 0
    %77 = vmatpush1.bf16.msra.mxu0 %v68
    %78 = vmatprep.subr.bf16.mxu0 0
    %79 = vmatpush1.bf16.msra.mxu0 %v69
    %80 = vmatprep.subr.bf16.mxu0 0
    %81 = vmatpush1.bf16.msra.mxu0 0
    %82 = vmatprep.subr.bf16.mxu0 0
    %83 = vmatpush1.bf16.msra.mxu0 0
    %84 = vmatprep.subr.bf16.mxu0 0
    %85 = vmatpush1.bf16.msra.mxu0 0
    %86 = vmatprep.subr.bf16.mxu0 0
    %87 = vmatpush1.bf16.msra.mxu0 0
    %88 = vmatprep.subr.bf16.mxu0 0
    %89 = vmatpush1.bf16.msra.mxu0 0
    %90 = vmatprep.subr.bf16.mxu0 0
    %91 = vmatpush1.bf16.msra.mxu0 0
    %92 = vmatprep.subr.bf16.mxu0 0
    %93 = vmatpush1.bf16.msra.mxu0 0
    %94 = vmatprep.subr.bf16.mxu0 0
    %95 = vmatpush1.bf16.msra.mxu0 0
    %96 = vmatprep.subr.bf16.mxu0 0
    %97 = vmatpush1.bf16.msra.mxu0 0
    %98 = vmatprep.subr.bf16.mxu0 0
    %99 = vmatpush1.bf16.msra.mxu0 0
    %100 = vmatprep.subr.bf16.mxu0 0
    %101 = vmatpush1.bf16.msra.mxu0 0
    %102 = vmatprep.subr.bf16.mxu0 0
    %103 = vmatpush1.bf16.msra.mxu0 0
    %104 = vmatprep.subr.bf16.mxu0 0
    %105 = vmatpush1.bf16.msra.mxu0 0
    %106 = vmatprep.subr.bf16.mxu0 0
    %107 = vmatpush1.bf16.msra.mxu0 0
    %108 = vmatprep.mubr.bf16.mxu0 0
    %109 = vmatmul.mubr.bf16.gmra.mrb[0].mxu0 %v74
    %v110 = vpop.f32.mrb[0].mxu0
    %v111 = vadd.f32 0.0, %v110
    %v112 = vpop.f32.mrb[0].mxu0
    %v113 = vpop.f32.mrb[0].mxu0
    %v114 = vadd.f32 0.0, %v113
    %v115 = vpop.f32.mrb[0].mxu0
    %116 = vdwg.mxu0
    %v117 = vadd.f32 %v51, %v111
    %v118 = vadd.f32 %v52, %v114
    %vm119 = vcmask 785408
    %120 = vst.msk [vmem:[#allocation2] sm:$0xff] %vm119, %v117
    %121 = vst.msk [vmem:[#allocation2 + $0x8] sm:$0xff] %vm119, %v118
    // Predicated region
    $region26: #{tpu_custom_call.1} parent=1 // pred_check
      %p122 = pneg %p44
    $region27: #{tpu_custom_call.1} parent=1 // pred_check_branch
      %124 = sbr.rel (%p122) target = $region29
    $region28: #{tpu_custom_call.1} parent=1 // pred_region
      %v125 = vld [vmem:[#allocation2] sm:$0xff]
      %v126 = vld [vmem:[#allocation2 + $0x8] sm:$0xff]
      %v127 = vld [vmem:[%s2] sm:$0x1]
      %v129 = vlaneseq
      %v130 = vshrl.u32 %v129, 7
      %v131 = vsub.s32 0, %v130
      %v132 = vrot.slane %v127, %v131
      %v134 = vadd.f32 %v125, %v132
      %v135 = vadd.f32 %v126, %v132
      %v136 = vpack.c.bf16 %v135, %v134
      %v138 = vunpack.c.l.b16 %v136
      %v139 = vunpack.c.h.b16 %v136
      %v140 = vpack.c.b16 %v138, %v138
      %v141 = vpack.c.b16 %v139, %v139
      %vm144 = vcmask 781312
      %145 = vst.msk [vmem:[#allocation8] sm:$0xf] %vm144, %v140
      %146 = vst.msk [vmem:[#allocation8 + $0x4] sm:$0xf] %vm144, %v141
    $region29: #{tpu_custom_call.1} parent=1 // pred_fallthru
      _
    // Predicated region
    $region30: #{tpu_custom_call.1} parent=1 // pred_check
      _
    $region31: #{tpu_custom_call.1} parent=1 // pred_check_branch
      %148 = sbr.rel (0) target = $region33
    $region32: #{tpu_custom_call.1} parent=1 // pred_region
      %s150 = ssub.s32 128, 128
      %151 = vsyncadd [#allocation5], %s150
      %s152 = sshll.u32 [#allocation8], 4
      %s153 = int_to_ptr.vmem [resolvable:$true] %s152
      %158 = dma.vmem_to_hbm [thread:$0]  %s153, 128, %s3, [#allocation5], 64, 64, 4
    $region33: #{tpu_custom_call.1} parent=1 // pred_fallthru
      _
    // Predicated region
    $region34: #{tpu_custom_call.1} parent=1 // pred_check
      _
    $region35: #{tpu_custom_call.1} parent=1 // pred_check_branch
      %160 = sbr.rel (0) target = $region37
    $region36: #{tpu_custom_call.1} parent=1 // pred_region
      %161 = dma.done [#allocation5], 128
    $region37: #{tpu_custom_call.1} parent=1 // pred_fallthru
      _
    %162 = vsyncpa [#allocation4], 1
    %163 = vsyncpa [#allocation7], 1
    %164 = vsyncpa [#allocation5], 1

</llo_original>
